<compile_context>
chip_gen: v5e
topology: v5e:2x2
jax: 0.10.0
libtpu: 0.0.40
codegen_flags: <defaults>
</compile_context>

<pallas_src>
import functools

import jax
import jax.numpy as jnp
from jax.experimental import pallas as pl
from jax.experimental.pallas import tpu as pltpu


def _round_up(x, m):
    return (x + m - 1) // m * m


def _rnn_kernel(emb_ref, h0_ref, w_ih_ref, w_hh_ref, b_ref,
                h_seq_ref, hidden_ref, *, tc, t_valid):
    """One time-chunk of the recurrence.

    emb_ref    (Tc, Bp, Ep)  compute dtype
    h0_ref     (Bp, Hp)      f32
    w_ih_ref   (Ep, Hp)      compute dtype
    w_hh_ref   (Hp, Hp)      compute dtype
    b_ref      (1, Hp)       f32 (b_ih + b_hh)
    h_seq_ref  (Tc, Bp, Hp)  per-chunk output block (feeds the FC matmul)
    hidden_ref (Bp, Hp)      resident output == recurrent state (f32)
    """
    c = pl.program_id(0)

    @pl.when(c == 0)
    def _():
        hidden_ref[...] = h0_ref[...]

    w_ih = w_ih_ref[...]
    w_hh = w_hh_ref[...]
    b = b_ref[...]
    cdt = w_ih.dtype

    def step(j, h):
        t = c * tc + j
        x_t = emb_ref[j]                                   # (Bp, Ep)
        pre = (jnp.dot(x_t, w_ih, preferred_element_type=jnp.float32)
               + jnp.dot(h.astype(cdt), w_hh, preferred_element_type=jnp.float32)
               + b)
        # Mask padded time steps so the final hidden state stays correct.
        h_new = jnp.where(t < t_valid, jnp.tanh(pre), h)
        h_seq_ref[j] = h_new.astype(h_seq_ref.dtype)       # full-tile store
        return h_new

    hidden_ref[...] = jax.lax.fori_loop(0, tc, step, hidden_ref[...], unroll=True)


def _fc_kernel(h_ref, w_ref, b_ref, o_ref):
    o_ref[...] = (jnp.dot(h_ref[...], w_ref[...], preferred_element_type=jnp.float32)
                  + b_ref[...]).astype(o_ref.dtype)


def text_generator_forward(x, params, hidden=None, *,
                           weight_dtype=jnp.float32, time_chunk=32):
    """x: (B, T) int32 token ids. Returns (logits (B, T, V), hidden (1, B, H))."""
    emb_table = params["embedding"]        # (V, E)
    w_ih, w_hh = params["w_ih"], params["w_hh"]        # (H, E), (H, H)
    b_ih, b_hh = params["b_ih"], params["b_hh"]        # (H,), (H,)
    w_fc, b_fc = params["w_fc"], params["b_fc"]        # (V, H), (V,)

    B, T = x.shape
    V, E = emb_table.shape
    H = w_hh.shape[0]

    if T == 0:  # empty-grid guard
        h0 = jnp.zeros((1, B, H), jnp.float32) if hidden is None else hidden.astype(jnp.float32)
        return jnp.zeros((B, 0, V), jnp.float32), h0

    # --- pad to hardware tiles: batch -> sublanes (8), features -> lanes (128) ---
    Bp = _round_up(B, 8)
    Ep = _round_up(E, 128)
    Hp = _round_up(H, 128)
    Vp = _round_up(V, 128)
    Tc = min(time_chunk, T)
    Tp = _round_up(T, Tc)
    n_chunks = Tp // Tc

    # Embedding gather (glue), produced directly time-major: (Tp, Bp, Ep).
    x_p = jnp.pad(x.astype(jnp.int32), ((0, Bp - B), (0, Tp - T)))
    emb_table_p = jnp.pad(emb_table, ((0, 0), (0, Ep - E)))
    emb = jnp.take(emb_table_p, x_p.T, axis=0).astype(weight_dtype)

    w_ih_t = jnp.pad(w_ih.T, ((0, Ep - E), (0, Hp - H))).astype(weight_dtype)   # (Ep, Hp)
    w_hh_t = jnp.pad(w_hh.T, ((0, Hp - H), (0, Hp - H))).astype(weight_dtype)   # (Hp, Hp)
    b_rnn = jnp.pad((b_ih + b_hh).astype(jnp.float32), (0, Hp - H))[None, :]    # (1, Hp)
    w_fc_t = jnp.pad(w_fc.T, ((0, Hp - H), (0, Vp - V))).astype(weight_dtype)   # (Hp, Vp)
    b_fc_p = jnp.pad(b_fc.astype(jnp.float32), (0, Vp - V))[None, :]            # (1, Vp)

    h0 = jnp.zeros((Bp, Hp), jnp.float32)
    if hidden is not None:
        h0 = h0.at[:B, :H].set(hidden[0].astype(jnp.float32))

    wbytes = jnp.dtype(weight_dtype).itemsize
    rnn_cost = pl.CostEstimate(
        flops=2 * Tp * Bp * Hp * (Ep + Hp),
        transcendentals=Tp * Bp * Hp,
        bytes_accessed=(Tp * Bp * Ep * wbytes + (Ep * Hp + Hp * Hp) * wbytes
                        + Tp * Bp * Hp * wbytes + 2 * Bp * Hp * 4),
    )

    # ---- sequential recurrence kernel (time-chunked) ----
    h_seq, h_final = pl.pallas_call(
        functools.partial(_rnn_kernel, tc=Tc, t_valid=T),
        grid=(n_chunks,),
        in_specs=[
            pl.BlockSpec((Tc, Bp, Ep), lambda c: (c, 0, 0)),   # emb chunk
            pl.BlockSpec((Bp, Hp), lambda c: (0, 0)),          # h0
            pl.BlockSpec((Ep, Hp), lambda c: (0, 0)),          # W_ih^T
            pl.BlockSpec((Hp, Hp), lambda c: (0, 0)),          # W_hh^T
            pl.BlockSpec((1, Hp), lambda c: (0, 0)),           # b
        ],
        out_specs=(
            pl.BlockSpec((Tc, Bp, Hp), lambda c: (c, 0, 0)),   # h per chunk (time-major)
            pl.BlockSpec((Bp, Hp), lambda c: (0, 0)),          # final hidden (resident)
        ),
        out_shape=(
            jax.ShapeDtypeStruct((Tp, Bp, Hp), weight_dtype),
            jax.ShapeDtypeStruct((Bp, Hp), jnp.float32),
        ),
        compiler_params=pltpu.CompilerParams(dimension_semantics=("arbitrary",)),
        cost_estimate=rnn_cost,
    )(emb, h0, w_ih_t, w_hh_t, b_rnn)

    # Cheap H-wide reorder (glue), then flatten so the FC matmul sees M = B*T rows.
    h_bt = jnp.transpose(h_seq, (1, 0, 2)).reshape(Bp * Tp, Hp)

    M = Bp * Tp
    Mt = M if M <= 512 else next(m for m in (512, 256, 128, 64, 32, 16, 8) if M % m == 0)
    Vt = Vp if Vp <= 512 else next(v for v in (512, 256, 128) if Vp % v == 0)

    fc_cost = pl.CostEstimate(
        flops=2 * M * Hp * Vp,
        transcendentals=0,
        bytes_accessed=M * Hp * wbytes + Hp * Vp * wbytes + M * Vp * 4,
    )

    # ---- batched, tiled output projection (fully parallel grid) ----
    logits_p = pl.pallas_call(
        _fc_kernel,
        grid=(M // Mt, Vp // Vt),
        in_specs=[
            pl.BlockSpec((Mt, Hp), lambda i, j: (i, 0)),       # hidden rows
            pl.BlockSpec((Hp, Vt), lambda i, j: (0, j)),       # W_fc^T tile
            pl.BlockSpec((1, Vt), lambda i, j: (0, j)),        # b_fc tile
        ],
        out_specs=pl.BlockSpec((Mt, Vt), lambda i, j: (i, j)),
        out_shape=jax.ShapeDtypeStruct((M, Vp), jnp.float32),
        compiler_params=pltpu.CompilerParams(dimension_semantics=("parallel", "parallel")),
        cost_estimate=fc_cost,
    )(h_bt, w_fc_t, b_fc_p)

    logits = logits_p.reshape(Bp, Tp, Vp)[:B, :T, :V]          # (B, T, V)
    return logits, h_final[:B, :H][None]                       # hidden: (1, B, H)


def _reference_forward(x, params, hidden=None):
    """Pure-JAX reference matching torch semantics."""
    emb = jnp.take(params["embedding"], x, axis=0)             # (B, T, E)
    B, T, _ = emb.shape
    H = params["w_hh"].shape[0]
    h = jnp.zeros((B, H), jnp.float32) if hidden is None else hidden[0]
    outs = []
    for t in range(T):
        h = jnp.tanh(emb[:, t, :] @ params["w_ih"].T + params["b_ih"]
                     + h @ params["w_hh"].T + params["b_hh"])
        outs.append(h)
    out = jnp.stack(outs, axis=1)                              # (B, T, H)
    logits = out @ params["w_fc"].T + params["b_fc"]           # (B, T, V)
    return logits, h[None]


def init_params(key, vocab_size, embedding_dim, hidden_dim):
    ks = jax.random.split(key, 7)
    bound = 1.0 / jnp.sqrt(hidden_dim)
    u = lambda k, shape: jax.random.uniform(k, shape, jnp.float32, -bound, bound)
    return {
        "embedding": jax.random.normal(ks[0], (vocab_size, embedding_dim), jnp.float32),
        "w_ih": u(ks[1], (hidden_dim, embedding_dim)),
        "w_hh": u(ks[2], (hidden_dim, hidden_dim)),
        "b_ih": u(ks[3], (hidden_dim,)),
        "b_hh": u(ks[4], (hidden_dim,)),
        "w_fc": u(ks[5], (vocab_size, hidden_dim)),
        "b_fc": u(ks[6], (vocab_size,)),
    }


if __name__ == "__main__":
    VOCAB, EMBED, HIDDEN = 32, 16, 32
    B, T = 2, 8

    key = jax.random.PRNGKey(0)
    k_param, k_x, k_h = jax.random.split(key, 3)
    params = init_params(k_param, VOCAB, EMBED, HIDDEN)
    x = jax.random.randint(k_x, (B, T), 0, VOCAB, dtype=jnp.int32)

    # f32 path (exact vs reference).
    logits, hidden = jax.jit(text_generator_forward)(x, params)
    jax.block_until_ready((logits, hidden))
    ref_logits, ref_hidden = _reference_forward(x, params)
    assert logits.shape == (B, T, VOCAB) and hidden.shape == (1, B, HIDDEN)
    assert jnp.allclose(logits, ref_logits, atol=1e-4, rtol=1e-4)
    assert jnp.allclose(hidden, ref_hidden, atol=1e-4, rtol=1e-4)

    # Exercise batch/time/feature padding, multi-chunk grid and a provided hidden state.
    B2, T2, V2, E2, H2 = 3, 13, 50, 20, 40
    params2 = init_params(jax.random.PRNGKey(1), V2, E2, H2)
    x2 = jax.random.randint(jax.random.PRNGKey(2), (B2, T2), 0, V2, dtype=jnp.int32)
    h_init = jax.random.normal(k_h, (1, B2, H2), jnp.float32)
    fwd_chunked = jax.jit(functools.partial(text_generator_forward, time_chunk=4))
    logits2, hidden2 = fwd_chunked(x2, params2, h_init)
    jax.block_until_ready((logits2, hidden2))
    ref_logits2, ref_hidden2 = _reference_forward(x2, params2, h_init)
    assert jnp.allclose(logits2, ref_logits2, atol=1e-4, rtol=1e-4)
    assert jnp.allclose(hidden2, ref_hidden2, atol=1e-4, rtol=1e-4)

    # bf16 weights/activations with f32 accumulation (v6e/v7x MXU path), looser tolerance.
    fwd_bf16 = jax.jit(functools.partial(text_generator_forward, weight_dtype=jnp.bfloat16))
    logits_bf, hidden_bf = fwd_bf16(x, params)
    jax.block_until_ready((logits_bf, hidden_bf))
    assert jnp.allclose(logits_bf, ref_logits, atol=5e-2, rtol=5e-2)
    assert jnp.allclose(hidden_bf, ref_hidden, atol=5e-2, rtol=5e-2)

    print("KERNEL_OK")
</pallas_src>

<mosaic_0001>
module attributes {stable_mosaic.version = 11 : i64} {
  func.func @_fc_kernel(%arg0: i32, %arg1: i32, %arg2: memref<64x128xf32, #tpu.memory_space<vmem>>, %arg3: memref<128x128xf32, #tpu.memory_space<vmem>>, %arg4: memref<1x128xf32, #tpu.memory_space<vmem>>, %arg5: memref<64x128xf32, #tpu.memory_space<vmem>>) attributes {dimension_semantics = [#tpu.dimension_semantics<parallel>, #tpu.dimension_semantics<parallel>], iteration_bounds = array<i64: 1, 1>, scalar_prefetch = 0 : i64, scratch_operands = 0 : i64, tpu.core_type = #tpu.core_type<tc>, window_params = [{transform_indices = @transform_0, window_bounds = array<i64: 64, 128>}, {transform_indices = @transform_1, window_bounds = array<i64: 128, 128>}, {transform_indices = @transform_2, window_bounds = array<i64: 1, 128>}, {transform_indices = @transform_3, window_bounds = array<i64: 64, 128>}]} {
    %c0 = arith.constant 0 : index
    %c0_0 = arith.constant 0 : index
    %0 = vector.load %arg2[%c0, %c0_0] : memref<64x128xf32, #tpu.memory_space<vmem>>, vector<64x128xf32>
    %c0_1 = arith.constant 0 : index
    %c0_2 = arith.constant 0 : index
    %1 = vector.load %arg3[%c0_1, %c0_2] : memref<128x128xf32, #tpu.memory_space<vmem>>, vector<128x128xf32>
    %cst = arith.constant dense<0.000000e+00> : vector<64x128xf32>
    %2 = tpu.matmul %0, %1, %cst {dimension_numbers = #tpu.dot_dimension_numbers<[1], [0], [0], [1], [0, 0, 1, 1], [], []>} : vector<64x128xf32>, vector<128x128xf32>, vector<64x128xf32> -> vector<64x128xf32>
    %c0_3 = arith.constant 0 : index
    %c0_4 = arith.constant 0 : index
    %3 = vector.load %arg4[%c0_3, %c0_4] : memref<1x128xf32, #tpu.memory_space<vmem>>, vector<1x128xf32>
    %4 = vector.broadcast %3 : vector<1x128xf32> to vector<64x128xf32>
    %5 = arith.addf %2, %4 : vector<64x128xf32>
    %c0_5 = arith.constant 0 : index
    %c0_6 = arith.constant 0 : index
    %6 = vector.load %arg5[%c0_5, %c0_6] : memref<64x128xf32, #tpu.memory_space<vmem>>, vector<64x128xf32>
    tpu.vector_store %arg5[%c0_5, %c0_6], %5 {strides = array<i32>} : memref<64x128xf32, #tpu.memory_space<vmem>>, vector<64x128xf32>,
    return
  }
  func.func @transform_0(%arg0: i32, %arg1: i32) -> (i32, i32) {
    %c0_i32 = arith.constant 0 : i32
    %c0_i32_0 = arith.constant 0 : i32
    return %arg0, %c0_i32 : i32, i32
  }
  func.func @transform_1(%arg0: i32, %arg1: i32) -> (i32, i32) {
    %c0_i32 = arith.constant 0 : i32
    %c0_i32_0 = arith.constant 0 : i32
    return %c0_i32, %arg1 : i32, i32
  }
  func.func @transform_2(%arg0: i32, %arg1: i32) -> (i32, i32) {
    %c0_i32 = arith.constant 0 : i32
    %c0_i32_0 = arith.constant 0 : i32
    return %c0_i32, %arg1 : i32, i32
  }
  func.func @transform_3(%arg0: i32, %arg1: i32) -> (i32, i32) {
    %c0_i32 = arith.constant 0 : i32
    return %arg0, %arg1 : i32, i32
  }
}

module attributes {stable_mosaic.version = 11 : i64} {
  func.func @_rnn_kernel(%arg0: i32, %arg1: memref<8x8x128xf32, #tpu.memory_space<vmem>>, %arg2: memref<8x128xf32, #tpu.memory_space<vmem>>, %arg3: memref<128x128xf32, #tpu.memory_space<vmem>>, %arg4: memref<128x128xf32, #tpu.memory_space<vmem>>, %arg5: memref<1x128xf32, #tpu.memory_space<vmem>>, %arg6: memref<8x8x128xf32, #tpu.memory_space<vmem>>, %arg7: memref<8x128xf32, #tpu.memory_space<vmem>>) attributes {dimension_semantics = [#tpu.dimension_semantics<arbitrary>], iteration_bounds = array<i64: 1>, scalar_prefetch = 0 : i64, scratch_operands = 0 : i64, tpu.core_type = #tpu.core_type<tc>, window_params = [{transform_indices = @transform_0, window_bounds = array<i64: 8, 8, 128>}, {pipeline_mode = #tpu.pipeline_mode<synchronous>, transform_indices = @transform_1, window_bounds = array<i64: 8, 128>}, {pipeline_mode = #tpu.pipeline_mode<synchronous>, transform_indices = @transform_2, window_bounds = array<i64: 128, 128>}, {pipeline_mode = #tpu.pipeline_mode<synchronous>, transform_indices = @transform_3, window_bounds = array<i64: 128, 128>}, {pipeline_mode = #tpu.pipeline_mode<synchronous>, transform_indices = @transform_4, window_bounds = array<i64: 1, 128>}, {transform_indices = @transform_5, window_bounds = array<i64: 8, 8, 128>}, {pipeline_mode = #tpu.pipeline_mode<synchronous>, transform_indices = @transform_6, window_bounds = array<i64: 8, 128>}]} {
    %c0_i32 = arith.constant 0 : i32
    %0 = arith.cmpi eq, %arg0, %c0_i32 : i32
    %1 = arith.extui %0 : i1 to i32
    %c0_i32_0 = arith.constant 0 : i32
    %2 = arith.cmpi ne, %1, %c0_i32_0 : i32
    scf.if %2 {
      %c0_74 = arith.constant 0 : index
      %c0_75 = arith.constant 0 : index
      %144 = vector.load %arg2[%c0_74, %c0_75] : memref<8x128xf32, #tpu.memory_space<vmem>>, vector<8x128xf32>
      %c0_76 = arith.constant 0 : index
      %c0_77 = arith.constant 0 : index
      %145 = vector.load %arg7[%c0_76, %c0_77] : memref<8x128xf32, #tpu.memory_space<vmem>>, vector<8x128xf32>
      tpu.vector_store %arg7[%c0_76, %c0_77], %144 {strides = array<i32>} : memref<8x128xf32, #tpu.memory_space<vmem>>, vector<8x128xf32>,
    } else {
    }
    %c0 = arith.constant 0 : index
    %c0_1 = arith.constant 0 : index
    %3 = vector.load %arg3[%c0, %c0_1] : memref<128x128xf32, #tpu.memory_space<vmem>>, vector<128x128xf32>
    %c0_2 = arith.constant 0 : index
    %c0_3 = arith.constant 0 : index
    %4 = vector.load %arg4[%c0_2, %c0_3] : memref<128x128xf32, #tpu.memory_space<vmem>>, vector<128x128xf32>
    %c0_4 = arith.constant 0 : index
    %c0_5 = arith.constant 0 : index
    %5 = vector.load %arg5[%c0_4, %c0_5] : memref<1x128xf32, #tpu.memory_space<vmem>>, vector<1x128xf32>
    %c0_6 = arith.constant 0 : index
    %c0_7 = arith.constant 0 : index
    %6 = vector.load %arg7[%c0_6, %c0_7] : memref<8x128xf32, #tpu.memory_space<vmem>>, vector<8x128xf32>
    %c0_i32_8 = arith.constant 0 : i32
    %c8_i32 = arith.constant 8 : i32
    %7 = arith.muli %arg0, %c8_i32 : i32
    %8 = arith.addi %7, %c0_i32_8 : i32
    %9 = arith.index_cast %c0_i32_8 : i32 to index
    %c0_9 = arith.constant 0 : index
    %c0_10 = arith.constant 0 : index
    %10 = vector.load %arg1[%9, %c0_9, %c0_10] : memref<8x8x128xf32, #tpu.memory_space<vmem>>, vector<1x8x128xf32>
    %11 = vector.shape_cast %10 : vector<1x8x128xf32> to vector<8x128xf32>
    %cst = arith.constant dense<0.000000e+00> : vector<8x128xf32>
    %12 = tpu.matmul %11, %3, %cst {dimension_numbers = #tpu.dot_dimension_numbers<[1], [0], [0], [1], [0, 0, 1, 1], [], []>} : vector<8x128xf32>, vector<128x128xf32>, vector<8x128xf32> -> vector<8x128xf32>
    %cst_11 = arith.constant dense<0.000000e+00> : vector<8x128xf32>
    %13 = tpu.matmul %6, %4, %cst_11 {dimension_numbers = #tpu.dot_dimension_numbers<[1], [0], [0], [1], [0, 0, 1, 1], [], []>} : vector<8x128xf32>, vector<128x128xf32>, vector<8x128xf32> -> vector<8x128xf32>
    %14 = arith.addf %12, %13 : vector<8x128xf32>
    %15 = vector.broadcast %5 : vector<1x128xf32> to vector<8x128xf32>
    %16 = arith.addf %14, %15 : vector<8x128xf32>
    %c8_i32_12 = arith.constant 8 : i32
    %17 = arith.cmpi slt, %8, %c8_i32_12 : i32
    %18 = math.tanh %16 : vector<8x128xf32>
    %19 = arith.select %17, %18, %6 : vector<8x128xf32>
    %20 = arith.index_cast %c0_i32_8 : i32 to index
    %c0_13 = arith.constant 0 : index
    %c0_14 = arith.constant 0 : index
    %21 = vector.load %arg6[%20, %c0_13, %c0_14] : memref<8x8x128xf32, #tpu.memory_space<vmem>>, vector<1x8x128xf32>
    %22 = vector.shape_cast %21 : vector<1x8x128xf32> to vector<8x128xf32>
    %23 = vector.shape_cast %19 : vector<8x128xf32> to vector<1x8x128xf32>
    tpu.vector_store %arg6[%20, %c0_13, %c0_14], %23 {strides = array<i32>} : memref<8x8x128xf32, #tpu.memory_space<vmem>>, vector<1x8x128xf32>,
    %c1_i32 = arith.constant 1 : i32
    %c8_i32_15 = arith.constant 8 : i32
    %24 = arith.muli %arg0, %c8_i32_15 : i32
    %25 = arith.addi %24, %c1_i32 : i32
    %26 = arith.index_cast %c1_i32 : i32 to index
    %c0_16 = arith.constant 0 : index
    %c0_17 = arith.constant 0 : index
    %27 = vector.load %arg1[%26, %c0_16, %c0_17] : memref<8x8x128xf32, #tpu.memory_space<vmem>>, vector<1x8x128xf32>
    %28 = vector.shape_cast %27 : vector<1x8x128xf32> to vector<8x128xf32>
    %cst_18 = arith.constant dense<0.000000e+00> : vector<8x128xf32>
    %29 = tpu.matmul %28, %3, %cst_18 {dimension_numbers = #tpu.dot_dimension_numbers<[1], [0], [0], [1], [0, 0, 1, 1], [], []>} : vector<8x128xf32>, vector<128x128xf32>, vector<8x128xf32> -> vector<8x128xf32>
    %cst_19 = arith.constant dense<0.000000e+00> : vector<8x128xf32>
    %30 = tpu.matmul %19, %4, %cst_19 {dimension_numbers = #tpu.dot_dimension_numbers<[1], [0], [0], [1], [0, 0, 1, 1], [], []>} : vector<8x128xf32>, vector<128x128xf32>, vector<8x128xf32> -> vector<8x128xf32>
    %31 = arith.addf %29, %30 : vector<8x128xf32>
    %32 = vector.broadcast %5 : vector<1x128xf32> to vector<8x128xf32>
    %33 = arith.addf %31, %32 : vector<8x128xf32>
    %c8_i32_20 = arith.constant 8 : i32
    %34 = arith.cmpi slt, %25, %c8_i32_20 : i32
    %35 = math.tanh %33 : vector<8x128xf32>
    %36 = arith.select %34, %35, %19 : vector<8x128xf32>
    %37 = arith.index_cast %c1_i32 : i32 to index
    %c0_21 = arith.constant 0 : index
    %c0_22 = arith.constant 0 : index
    %38 = vector.load %arg6[%37, %c0_21, %c0_22] : memref<8x8x128xf32, #tpu.memory_space<vmem>>, vector<1x8x128xf32>
    %39 = vector.shape_cast %38 : vector<1x8x128xf32> to vector<8x128xf32>
    %40 = vector.shape_cast %36 : vector<8x128xf32> to vector<1x8x128xf32>
    tpu.vector_store %arg6[%37, %c0_21, %c0_22], %40 {strides = array<i32>} : memref<8x8x128xf32, #tpu.memory_space<vmem>>, vector<1x8x128xf32>,
    %c2_i32 = arith.constant 2 : i32
    %c8_i32_23 = arith.constant 8 : i32
    %41 = arith.muli %arg0, %c8_i32_23 : i32
    %42 = arith.addi %41, %c2_i32 : i32
    %43 = arith.index_cast %c2_i32 : i32 to index
    %c0_24 = arith.constant 0 : index
    %c0_25 = arith.constant 0 : index
    %44 = vector.load %arg1[%43, %c0_24, %c0_25] : memref<8x8x128xf32, #tpu.memory_space<vmem>>, vector<1x8x128xf32>
    %45 = vector.shape_cast %44 : vector<1x8x128xf32> to vector<8x128xf32>
    %cst_26 = arith.constant dense<0.000000e+00> : vector<8x128xf32>
    %46 = tpu.matmul %45, %3, %cst_26 {dimension_numbers = #tpu.dot_dimension_numbers<[1], [0], [0], [1], [0, 0, 1, 1], [], []>} : vector<8x128xf32>, vector<128x128xf32>, vector<8x128xf32> -> vector<8x128xf32>
    %cst_27 = arith.constant dense<0.000000e+00> : vector<8x128xf32>
    %47 = tpu.matmul %36, %4, %cst_27 {dimension_numbers = #tpu.dot_dimension_numbers<[1], [0], [0], [1], [0, 0, 1, 1], [], []>} : vector<8x128xf32>, vector<128x128xf32>, vector<8x128xf32> -> vector<8x128xf32>
    %48 = arith.addf %46, %47 : vector<8x128xf32>
    %49 = vector.broadcast %5 : vector<1x128xf32> to vector<8x128xf32>
    %50 = arith.addf %48, %49 : vector<8x128xf32>
    %c8_i32_28 = arith.constant 8 : i32
    %51 = arith.cmpi slt, %42, %c8_i32_28 : i32
    %52 = math.tanh %50 : vector<8x128xf32>
    %53 = arith.select %51, %52, %36 : vector<8x128xf32>
    %54 = arith.index_cast %c2_i32 : i32 to index
    %c0_29 = arith.constant 0 : index
    %c0_30 = arith.constant 0 : index
    %55 = vector.load %arg6[%54, %c0_29, %c0_30] : memref<8x8x128xf32, #tpu.memory_space<vmem>>, vector<1x8x128xf32>
    %56 = vector.shape_cast %55 : vector<1x8x128xf32> to vector<8x128xf32>
    %57 = vector.shape_cast %53 : vector<8x128xf32> to vector<1x8x128xf32>
    tpu.vector_store %arg6[%54, %c0_29, %c0_30], %57 {strides = array<i32>} : memref<8x8x128xf32, #tpu.memory_space<vmem>>, vector<1x8x128xf32>,
    %c3_i32 = arith.constant 3 : i32
    %c8_i32_31 = arith.constant 8 : i32
    %58 = arith.muli %arg0, %c8_i32_31 : i32
    %59 = arith.addi %58, %c3_i32 : i32
    %60 = arith.index_cast %c3_i32 : i32 to index
    %c0_32 = arith.constant 0 : index
    %c0_33 = arith.constant 0 : index
    %61 = vector.load %arg1[%60, %c0_32, %c0_33] : memref<8x8x128xf32, #tpu.memory_space<vmem>>, vector<1x8x128xf32>
    %62 = vector.shape_cast %61 : vector<1x8x128xf32> to vector<8x128xf32>
    %cst_34 = arith.constant dense<0.000000e+00> : vector<8x128xf32>
    %63 = tpu.matmul %62, %3, %cst_34 {dimension_numbers = #tpu.dot_dimension_numbers<[1], [0], [0], [1], [0, 0, 1, 1], [], []>} : vector<8x128xf32>, vector<128x128xf32>, vector<8x128xf32> -> vector<8x128xf32>
    %cst_35 = arith.constant dense<0.000000e+00> : vector<8x128xf32>
    %64 = tpu.matmul %53, %4, %cst_35 {dimension_numbers = #tpu.dot_dimension_numbers<[1], [0], [0], [1], [0, 0, 1, 1], [], []>} : vector<8x128xf32>, vector<128x128xf32>, vector<8x128xf32> -> vector<8x128xf32>
    %65 = arith.addf %63, %64 : vector<8x128xf32>
    %66 = vector.broadcast %5 : vector<1x128xf32> to vector<8x128xf32>
    %67 = arith.addf %65, %66 : vector<8x128xf32>
    %c8_i32_36 = arith.constant 8 : i32
    %68 = arith.cmpi slt, %59, %c8_i32_36 : i32
    %69 = math.tanh %67 : vector<8x128xf32>
    %70 = arith.select %68, %69, %53 : vector<8x128xf32>
    %71 = arith.index_cast %c3_i32 : i32 to index
    %c0_37 = arith.constant 0 : index
    %c0_38 = arith.constant 0 : index
    %72 = vector.load %arg6[%71, %c0_37, %c0_38] : memref<8x8x128xf32, #tpu.memory_space<vmem>>, vector<1x8x128xf32>
    %73 = vector.shape_cast %72 : vector<1x8x128xf32> to vector<8x128xf32>
    %74 = vector.shape_cast %70 : vector<8x128xf32> to vector<1x8x128xf32>
    tpu.vector_store %arg6[%71, %c0_37, %c0_38], %74 {strides = array<i32>} : memref<8x8x128xf32, #tpu.memory_space<vmem>>, vector<1x8x128xf32>,
    %c4_i32 = arith.constant 4 : i32
    %c8_i32_39 = arith.constant 8 : i32
    %75 = arith.muli %arg0, %c8_i32_39 : i32
    %76 = arith.addi %75, %c4_i32 : i32
    %77 = arith.index_cast %c4_i32 : i32 to index
    %c0_40 = arith.constant 0 : index
    %c0_41 = arith.constant 0 : index
    %78 = vector.load %arg1[%77, %c0_40, %c0_41] : memref<8x8x128xf32, #tpu.memory_space<vmem>>, vector<1x8x128xf32>
    %79 = vector.shape_cast %78 : vector<1x8x128xf32> to vector<8x128xf32>
    %cst_42 = arith.constant dense<0.000000e+00> : vector<8x128xf32>
    %80 = tpu.matmul %79, %3, %cst_42 {dimension_numbers = #tpu.dot_dimension_numbers<[1], [0], [0], [1], [0, 0, 1, 1], [], []>} : vector<8x128xf32>, vector<128x128xf32>, vector<8x128xf32> -> vector<8x128xf32>
    %cst_43 = arith.constant dense<0.000000e+00> : vector<8x128xf32>
    %81 = tpu.matmul %70, %4, %cst_43 {dimension_numbers = #tpu.dot_dimension_numbers<[1], [0], [0], [1], [0, 0, 1, 1], [], []>} : vector<8x128xf32>, vector<128x128xf32>, vector<8x128xf32> -> vector<8x128xf32>
    %82 = arith.addf %80, %81 : vector<8x128xf32>
    %83 = vector.broadcast %5 : vector<1x128xf32> to vector<8x128xf32>
    %84 = arith.addf %82, %83 : vector<8x128xf32>
    %c8_i32_44 = arith.constant 8 : i32
    %85 = arith.cmpi slt, %76, %c8_i32_44 : i32
    %86 = math.tanh %84 : vector<8x128xf32>
    %87 = arith.select %85, %86, %70 : vector<8x128xf32>
    %88 = arith.index_cast %c4_i32 : i32 to index
    %c0_45 = arith.constant 0 : index
    %c0_46 = arith.constant 0 : index
    %89 = vector.load %arg6[%88, %c0_45, %c0_46] : memref<8x8x128xf32, #tpu.memory_space<vmem>>, vector<1x8x128xf32>
    %90 = vector.shape_cast %89 : vector<1x8x128xf32> to vector<8x128xf32>
    %91 = vector.shape_cast %87 : vector<8x128xf32> to vector<1x8x128xf32>
    tpu.vector_store %arg6[%88, %c0_45, %c0_46], %91 {strides = array<i32>} : memref<8x8x128xf32, #tpu.memory_space<vmem>>, vector<1x8x128xf32>,
    %c5_i32 = arith.constant 5 : i32
    %c8_i32_47 = arith.constant 8 : i32
    %92 = arith.muli %arg0, %c8_i32_47 : i32
    %93 = arith.addi %92, %c5_i32 : i32
    %94 = arith.index_cast %c5_i32 : i32 to index
    %c0_48 = arith.constant 0 : index
    %c0_49 = arith.constant 0 : index
    %95 = vector.load %arg1[%94, %c0_48, %c0_49] : memref<8x8x128xf32, #tpu.memory_space<vmem>>, vector<1x8x128xf32>
    %96 = vector.shape_cast %95 : vector<1x8x128xf32> to vector<8x128xf32>
    %cst_50 = arith.constant dense<0.000000e+00> : vector<8x128xf32>
    %97 = tpu.matmul %96, %3, %cst_50 {dimension_numbers = #tpu.dot_dimension_numbers<[1], [0], [0], [1], [0, 0, 1, 1], [], []>} : vector<8x128xf32>, vector<128x128xf32>, vector<8x128xf32> -> vector<8x128xf32>
    %cst_51 = arith.constant dense<0.000000e+00> : vector<8x128xf32>
    %98 = tpu.matmul %87, %4, %cst_51 {dimension_numbers = #tpu.dot_dimension_numbers<[1], [0], [0], [1], [0, 0, 1, 1], [], []>} : vector<8x128xf32>, vector<128x128xf32>, vector<8x128xf32> -> vector<8x128xf32>
    %99 = arith.addf %97, %98 : vector<8x128xf32>
    %100 = vector.broadcast %5 : vector<1x128xf32> to vector<8x128xf32>
    %101 = arith.addf %99, %100 : vector<8x128xf32>
    %c8_i32_52 = arith.constant 8 : i32
    %102 = arith.cmpi slt, %93, %c8_i32_52 : i32
    %103 = math.tanh %101 : vector<8x128xf32>
    %104 = arith.select %102, %103, %87 : vector<8x128xf32>
    %105 = arith.index_cast %c5_i32 : i32 to index
    %c0_53 = arith.constant 0 : index
    %c0_54 = arith.constant 0 : index
    %106 = vector.load %arg6[%105, %c0_53, %c0_54] : memref<8x8x128xf32, #tpu.memory_space<vmem>>, vector<1x8x128xf32>
    %107 = vector.shape_cast %106 : vector<1x8x128xf32> to vector<8x128xf32>
    %108 = vector.shape_cast %104 : vector<8x128xf32> to vector<1x8x128xf32>
    tpu.vector_store %arg6[%105, %c0_53, %c0_54], %108 {strides = array<i32>} : memref<8x8x128xf32, #tpu.memory_space<vmem>>, vector<1x8x128xf32>,
    %c6_i32 = arith.constant 6 : i32
    %c8_i32_55 = arith.constant 8 : i32
    %109 = arith.muli %arg0, %c8_i32_55 : i32
    %110 = arith.addi %109, %c6_i32 : i32
    %111 = arith.index_cast %c6_i32 : i32 to index
    %c0_56 = arith.constant 0 : index
    %c0_57 = arith.constant 0 : index
    %112 = vector.load %arg1[%111, %c0_56, %c0_57] : memref<8x8x128xf32, #tpu.memory_space<vmem>>, vector<1x8x128xf32>
    %113 = vector.shape_cast %112 : vector<1x8x128xf32> to vector<8x128xf32>
    %cst_58 = arith.constant dense<0.000000e+00> : vector<8x128xf32>
    %114 = tpu.matmul %113, %3, %cst_58 {dimension_numbers = #tpu.dot_dimension_numbers<[1], [0], [0], [1], [0, 0, 1, 1], [], []>} : vector<8x128xf32>, vector<128x128xf32>, vector<8x128xf32> -> vector<8x128xf32>
    %cst_59 = arith.constant dense<0.000000e+00> : vector<8x128xf32>
    %115 = tpu.matmul %104, %4, %cst_59 {dimension_numbers = #tpu.dot_dimension_numbers<[1], [0], [0], [1], [0, 0, 1, 1], [], []>} : vector<8x128xf32>, vector<128x128xf32>, vector<8x128xf32> -> vector<8x128xf32>
    %116 = arith.addf %114, %115 : vector<8x128xf32>
    %117 = vector.broadcast %5 : vector<1x128xf32> to vector<8x128xf32>
    %118 = arith.addf %116, %117 : vector<8x128xf32>
    %c8_i32_60 = arith.constant 8 : i32
    %119 = arith.cmpi slt, %110, %c8_i32_60 : i32
    %120 = math.tanh %118 : vector<8x128xf32>
    %121 = arith.select %119, %120, %104 : vector<8x128xf32>
    %122 = arith.index_cast %c6_i32 : i32 to index
    %c0_61 = arith.constant 0 : index
    %c0_62 = arith.constant 0 : index
    %123 = vector.load %arg6[%122, %c0_61, %c0_62] : memref<8x8x128xf32, #tpu.memory_space<vmem>>, vector<1x8x128xf32>
    %124 = vector.shape_cast %123 : vector<1x8x128xf32> to vector<8x128xf32>
    %125 = vector.shape_cast %121 : vector<8x128xf32> to vector<1x8x128xf32>
    tpu.vector_store %arg6[%122, %c0_61, %c0_62], %125 {strides = array<i32>} : memref<8x8x128xf32, #tpu.memory_space<vmem>>, vector<1x8x128xf32>,
    %c7_i32 = arith.constant 7 : i32
    %c8_i32_63 = arith.constant 8 : i32
    %126 = arith.muli %arg0, %c8_i32_63 : i32
    %127 = arith.addi %126, %c7_i32 : i32
    %128 = arith.index_cast %c7_i32 : i32 to index
    %c0_64 = arith.constant 0 : index
    %c0_65 = arith.constant 0 : index
    %129 = vector.load %arg1[%128, %c0_64, %c0_65] : memref<8x8x128xf32, #tpu.memory_space<vmem>>, vector<1x8x128xf32>
    %130 = vector.shape_cast %129 : vector<1x8x128xf32> to vector<8x128xf32>
    %cst_66 = arith.constant dense<0.000000e+00> : vector<8x128xf32>
    %131 = tpu.matmul %130, %3, %cst_66 {dimension_numbers = #tpu.dot_dimension_numbers<[1], [0], [0], [1], [0, 0, 1, 1], [], []>} : vector<8x128xf32>, vector<128x128xf32>, vector<8x128xf32> -> vector<8x128xf32>
    %cst_67 = arith.constant dense<0.000000e+00> : vector<8x128xf32>
    %132 = tpu.matmul %121, %4, %cst_67 {dimension_numbers = #tpu.dot_dimension_numbers<[1], [0], [0], [1], [0, 0, 1, 1], [], []>} : vector<8x128xf32>, vector<128x128xf32>, vector<8x128xf32> -> vector<8x128xf32>
    %133 = arith.addf %131, %132 : vector<8x128xf32>
    %134 = vector.broadcast %5 : vector<1x128xf32> to vector<8x128xf32>
    %135 = arith.addf %133, %134 : vector<8x128xf32>
    %c8_i32_68 = arith.constant 8 : i32
    %136 = arith.cmpi slt, %127, %c8_i32_68 : i32
    %137 = math.tanh %135 : vector<8x128xf32>
    %138 = arith.select %136, %137, %121 : vector<8x128xf32>
    %139 = arith.index_cast %c7_i32 : i32 to index
    %c0_69 = arith.constant 0 : index
    %c0_70 = arith.constant 0 : index
    %140 = vector.load %arg6[%139, %c0_69, %c0_70] : memref<8x8x128xf32, #tpu.memory_space<vmem>>, vector<1x8x128xf32>
    %141 = vector.shape_cast %140 : vector<1x8x128xf32> to vector<8x128xf32>
    %142 = vector.shape_cast %138 : vector<8x128xf32> to vector<1x8x128xf32>
    tpu.vector_store %arg6[%139, %c0_69, %c0_70], %142 {strides = array<i32>} : memref<8x8x128xf32, #tpu.memory_space<vmem>>, vector<1x8x128xf32>,
    %c8_i32_71 = arith.constant 8 : i32
    %c0_72 = arith.constant 0 : index
    %c0_73 = arith.constant 0 : index
    %143 = vector.load %arg7[%c0_72, %c0_73] : memref<8x128xf32, #tpu.memory_space<vmem>>, vector<8x128xf32>
    tpu.vector_store %arg7[%c0_72, %c0_73], %138 {strides = array<i32>} : memref<8x128xf32, #tpu.memory_space<vmem>>, vector<8x128xf32>,
    return
  }
  func.func @transform_0(%arg0: i32) -> (i32, i32, i32) {
    %c0_i32 = arith.constant 0 : i32
    %c0_i32_0 = arith.constant 0 : i32
    %c0_i32_1 = arith.constant 0 : i32
    return %arg0, %c0_i32, %c0_i32_0 : i32, i32, i32
  }
  func.func @transform_1(%arg0: i32) -> (i32, i32) {
    %c0_i32 = arith.constant 0 : i32
    %c0_i32_0 = arith.constant 0 : i32
    %c0_i32_1 = arith.constant 0 : i32
    return %c0_i32, %c0_i32_0 : i32, i32
  }
  func.func @transform_2(%arg0: i32) -> (i32, i32) {
    %c0_i32 = arith.constant 0 : i32
    %c0_i32_0 = arith.constant 0 : i32
    %c0_i32_1 = arith.constant 0 : i32
    return %c0_i32, %c0_i32_0 : i32, i32
  }
  func.func @transform_3(%arg0: i32) -> (i32, i32) {
    %c0_i32 = arith.constant 0 : i32
    %c0_i32_0 = arith.constant 0 : i32
    %c0_i32_1 = arith.constant 0 : i32
    return %c0_i32, %c0_i32_0 : i32, i32
  }
  func.func @transform_4(%arg0: i32) -> (i32, i32) {
    %c0_i32 = arith.constant 0 : i32
    %c0_i32_0 = arith.constant 0 : i32
    %c0_i32_1 = arith.constant 0 : i32
    return %c0_i32, %c0_i32_0 : i32, i32
  }
  func.func @transform_5(%arg0: i32) -> (i32, i32, i32) {
    %c0_i32 = arith.constant 0 : i32
    %c0_i32_0 = arith.constant 0 : i32
    %c0_i32_1 = arith.constant 0 : i32
    return %arg0, %c0_i32, %c0_i32_0 : i32, i32, i32
  }
  func.func @transform_6(%arg0: i32) -> (i32, i32) {
    %c0_i32 = arith.constant 0 : i32
    %c0_i32_0 = arith.constant 0 : i32
    %c0_i32_1 = arith.constant 0 : i32
    return %c0_i32, %c0_i32_0 : i32, i32
  }
}

</mosaic_0001>

<llo_original>
// kernel: text_generator_forward.3
$region0: #{text_generator_forward.3}
  #allocation0 [shape = 'u32[]', space=smem, size = 0x4, offset = 0x4, fixed_abs, tag = 'smem constant byte address 0x4 - core index']
  #allocation1 [shape = 'u32[72,128]{1,0:T(1,128)}', space=vmem, size = 0x9000, scoped, tag = 'internal scratch']
  %s0 = inlined_call_operand.vmem [shape: f32[64,128], index: 0, kind: input, shape index: {}]
  %s1 = inlined_call_operand.vmem [shape: f32[128,128], index: 1, kind: input, shape index: {}]
  %s2 = inlined_call_operand.vmem [shape: f32[1,128], index: 2, kind: input, shape index: {}]
  %s3 = inlined_call_operand.vmem [shape: f32[64,128], index: 3, kind: output, shape index: {}]
  %s4 = sld [smem:[#allocation0]]
  $region22: #{text_generator_forward.3} parent=0
    _
  %s6 = ssub.s32 1, %s4
  %s7 = scalar_select 0, %s6, %s4
  // Predicated region
  $region2: #{text_generator_forward.3} parent=0 // pred_check
    _
  $region3: #{text_generator_forward.3} parent=0 // pred_check_branch
    %9 = sbr.rel (0) target = $region5
  $region4: #{text_generator_forward.3} parent=0 // pred_region
    _
  $region5: #{text_generator_forward.3} parent=0 // pred_fallthru
    _
  // Predicated region
  $region6: #{text_generator_forward.3} parent=0 // pred_check
    _
  $region7: #{text_generator_forward.3} parent=0 // pred_check_branch
    %11 = sbr.rel (0) target = $region9
  $region8: #{text_generator_forward.3} parent=0 // pred_region
    _
  $region9: #{text_generator_forward.3} parent=0 // pred_fallthru
    _
  // Predicated region
  $region10: #{text_generator_forward.3} parent=0 // pred_check
    _
  $region11: #{text_generator_forward.3} parent=0 // pred_check_branch
    %13 = sbr.rel (0) target = $region13
  $region12: #{text_generator_forward.3} parent=0 // pred_region
    _
  $region13: #{text_generator_forward.3} parent=0 // pred_fallthru
    _
  %v14 = vld [vmem:[%s0] sm:$0xff]
  %v15 = vld [vmem:[%s0 + $0x8] sm:$0xff]
  %v16 = vld [vmem:[%s0 + $0x10] sm:$0xff]
  %v17 = vld [vmem:[%s0 + $0x18] sm:$0xff]
  %v18 = vld [vmem:[%s0 + $0x20] sm:$0xff]
  %v19 = vld [vmem:[%s0 + $0x28] sm:$0xff]
  %v20 = vld [vmem:[%s0 + $0x30] sm:$0xff]
  %v21 = vld [vmem:[%s0 + $0x38] sm:$0xff]
  %v22 = vld [vmem:[%s1] sm:$0xff]
  %v23 = vld [vmem:[%s1 + $0x8] sm:$0xff]
  %v24 = vld [vmem:[%s1 + $0x10] sm:$0xff]
  %v25 = vld [vmem:[%s1 + $0x18] sm:$0xff]
  %v26 = vld [vmem:[%s1 + $0x20] sm:$0xff]
  %v27 = vld [vmem:[%s1 + $0x28] sm:$0xff]
  %v28 = vld [vmem:[%s1 + $0x30] sm:$0xff]
  %v29 = vld [vmem:[%s1 + $0x38] sm:$0xff]
  %v30 = vld [vmem:[%s1 + $0x40] sm:$0xff]
  %v31 = vld [vmem:[%s1 + $0x48] sm:$0xff]
  %v32 = vld [vmem:[%s1 + $0x50] sm:$0xff]
  %v33 = vld [vmem:[%s1 + $0x58] sm:$0xff]
  %v34 = vld [vmem:[%s1 + $0x60] sm:$0xff]
  %v35 = vld [vmem:[%s1 + $0x68] sm:$0xff]
  %v36 = vld [vmem:[%s1 + $0x70] sm:$0xff]
  %v37 = vld [vmem:[%s1 + $0x78] sm:$0xff]
  %v38 = vld [vmem:[%s2] sm:$0x1]
  %v40 = vperm.slane %v38, 0
  %42 = vmatpush.msra.mxu0 %v37
  %43 = vmatpush.msra.mxu0 %v36
  %44 = vmatpush.msra.mxu0 %v35
  %45 = vmatpush.msra.mxu0 %v34
  %46 = vmatpush.msra.mxu0 %v33
  %47 = vmatpush.msra.mxu0 %v32
  %48 = vmatpush.msra.mxu0 %v31
  %49 = vmatpush.msra.mxu0 %v30
  %50 = vmatpush.msra.mxu0 %v29
  %51 = vmatpush.msra.mxu0 %v28
  %52 = vmatpush.msra.mxu0 %v27
  %53 = vmatpush.msra.mxu0 %v26
  %54 = vmatpush.msra.mxu0 %v25
  %55 = vmatpush.msra.mxu0 %v24
  %56 = vmatpush.msra.mxu0 %v23
  %57 = vmatpush.msra.mxu0 %v22
  %58 = vmatmul.f32.gmra.mxu0 %v14
  %v59 = vpop.f32.mrf.mxu0
  %v60 = vadd.f32 %v40, %v59
  %61 = vmatmul.f32.gmra.mxu0 %v15
  %v62 = vpop.f32.mrf.mxu0
  %v63 = vadd.f32 %v40, %v62
  %64 = vmatmul.f32.gmra.mxu0 %v16
  %v65 = vpop.f32.mrf.mxu0
  %v66 = vadd.f32 %v40, %v65
  %67 = vmatmul.f32.gmra.mxu0 %v17
  %v68 = vpop.f32.mrf.mxu0
  %v69 = vadd.f32 %v40, %v68
  %70 = vmatmul.f32.gmra.mxu0 %v18
  %v71 = vpop.f32.mrf.mxu0
  %v72 = vadd.f32 %v40, %v71
  %73 = vmatmul.f32.gmra.mxu0 %v19
  %v74 = vpop.f32.mrf.mxu0
  %v75 = vadd.f32 %v40, %v74
  %76 = vmatmul.f32.gmra.mxu0 %v20
  %v77 = vpop.f32.mrf.mxu0
  %v78 = vadd.f32 %v40, %v77
  %79 = vmatmul.f32.gmra.mxu0 %v21
  %v80 = vpop.f32.mrf.mxu0
  %v81 = vadd.f32 %v40, %v80
  %82 = vdwg.mxu0
  %83 = vst [vmem:[%s3] sm:$0xff] %v60
  %84 = vst [vmem:[%s3 + $0x8] sm:$0xff] %v63
  %85 = vst [vmem:[%s3 + $0x10] sm:$0xff] %v66
  %86 = vst [vmem:[%s3 + $0x18] sm:$0xff] %v69
  %87 = vst [vmem:[%s3 + $0x20] sm:$0xff] %v72
  %88 = vst [vmem:[%s3 + $0x28] sm:$0xff] %v75
  %89 = vst [vmem:[%s3 + $0x30] sm:$0xff] %v78
  %90 = vst [vmem:[%s3 + $0x38] sm:$0xff] %v81
  // Predicated region
  $region14: #{text_generator_forward.3} parent=0 // pred_check
    _
  $region15: #{text_generator_forward.3} parent=0 // pred_check_branch
    %92 = sbr.rel (0) target = $region17
  $region16: #{text_generator_forward.3} parent=0 // pred_region
    _
  $region17: #{text_generator_forward.3} parent=0 // pred_fallthru
    _
  // Predicated region
  $region18: #{text_generator_forward.3} parent=0 // pred_check
    _
  $region19: #{text_generator_forward.3} parent=0 // pred_check_branch
    %94 = sbr.rel (0) target = $region21
  $region20: #{text_generator_forward.3} parent=0 // pred_region
    _
  $region21: #{text_generator_forward.3} parent=0 // pred_fallthru
    _

// kernel: text_generator_forward.2
$region0: #{text_generator_forward.2}
  #allocation0 [shape = 'u32[]', space=smem, size = 0x4, offset = 0x4, fixed_abs, tag = 'smem constant byte address 0x4 - core index']
  #allocation1 [shape = 'u32[72,128]{1,0:T(1,128)}', space=vmem, size = 0x9000, scoped, tag = 'internal scratch']
  %s0 = inlined_call_operand.vmem [shape: f32[8,8,128], index: 0, kind: input, shape index: {}]
  %s1 = inlined_call_operand.vmem [shape: f32[8,128], index: 1, kind: input, shape index: {}]
  %s2 = inlined_call_operand.vmem [shape: f32[128,128], index: 2, kind: input, shape index: {}]
  %s3 = inlined_call_operand.vmem [shape: f32[128,128], index: 3, kind: input, shape index: {}]
  %s4 = inlined_call_operand.vmem [shape: f32[1,128], index: 4, kind: input, shape index: {}]
  %s5 = inlined_call_operand.vmem [shape: f32[8,8,128], index: 5, kind: output, shape index: {0}]
  %s6 = inlined_call_operand.vmem [shape: f32[8,128], index: 6, kind: output, shape index: {1}]
  %7 = xla_tuple %s5, %s6
  %s8 = sld [smem:[#allocation0]]
  $region42: #{text_generator_forward.2} parent=0
    _
  %s10 = ssub.s32 1, %s8
  %s11 = scalar_select 0, %s10, %s8
  // Predicated region
  $region2: #{text_generator_forward.2} parent=0 // pred_check
    _
  $region3: #{text_generator_forward.2} parent=0 // pred_check_branch
    %13 = sbr.rel (0) target = $region5
  $region4: #{text_generator_forward.2} parent=0 // pred_region
    _
  $region5: #{text_generator_forward.2} parent=0 // pred_fallthru
    _
  // Predicated region
  $region6: #{text_generator_forward.2} parent=0 // pred_check
    _
  $region7: #{text_generator_forward.2} parent=0 // pred_check_branch
    %15 = sbr.rel (0) target = $region9
  $region8: #{text_generator_forward.2} parent=0 // pred_region
    _
  $region9: #{text_generator_forward.2} parent=0 // pred_fallthru
    _
  // Predicated region
  $region10: #{text_generator_forward.2} parent=0 // pred_check
    _
  $region11: #{text_generator_forward.2} parent=0 // pred_check_branch
    %17 = sbr.rel (0) target = $region13
  $region12: #{text_generator_forward.2} parent=0 // pred_region
    _
  $region13: #{text_generator_forward.2} parent=0 // pred_fallthru
    _
  // Predicated region
  $region14: #{text_generator_forward.2} parent=0 // pred_check
    _
  $region15: #{text_generator_forward.2} parent=0 // pred_check_branch
    %19 = sbr.rel (0) target = $region17
  $region16: #{text_generator_forward.2} parent=0 // pred_region
    _
  $region17: #{text_generator_forward.2} parent=0 // pred_fallthru
    _
  // Predicated region
  $region18: #{text_generator_forward.2} parent=0 // pred_check
    _
  $region19: #{text_generator_forward.2} parent=0 // pred_check_branch
    %21 = sbr.rel (0) target = $region21
  $region20: #{text_generator_forward.2} parent=0 // pred_region
    _
  $region21: #{text_generator_forward.2} parent=0 // pred_fallthru
    _
  %p22 = scmp.eq.s32.totalorder 0, 0
  // Predicated region
  $region22: #{text_generator_forward.2} parent=0 // pred_check
    %p23 = pneg %p22
  $region23: #{text_generator_forward.2} parent=0 // pred_check_branch
    %25 = sbr.rel (%p23) target = $region25
  $region24: #{text_generator_forward.2} parent=0 // pred_region
    %v26 = vld [vmem:[%s1] sm:$0xff]
    %27 = vst [vmem:[%s6] sm:$0xff] %v26
  $region25: #{text_generator_forward.2} parent=0 // pred_fallthru
    _
  %v28 = vld [vmem:[%s2] sm:$0xff]
  %v29 = vld [vmem:[%s2 + $0x8] sm:$0xff]
  %v30 = vld [vmem:[%s2 + $0x10] sm:$0xff]
  %v31 = vld [vmem:[%s2 + $0x18] sm:$0xff]
  %v32 = vld [vmem:[%s2 + $0x20] sm:$0xff]
  %v33 = vld [vmem:[%s2 + $0x28] sm:$0xff]
  %v34 = vld [vmem:[%s2 + $0x30] sm:$0xff]
  %v35 = vld [vmem:[%s2 + $0x38] sm:$0xff]
  %v36 = vld [vmem:[%s2 + $0x40] sm:$0xff]
  %v37 = vld [vmem:[%s2 + $0x48] sm:$0xff]
  %v38 = vld [vmem:[%s2 + $0x50] sm:$0xff]
  %v39 = vld [vmem:[%s2 + $0x58] sm:$0xff]
  %v40 = vld [vmem:[%s2 + $0x60] sm:$0xff]
  %v41 = vld [vmem:[%s2 + $0x68] sm:$0xff]
  %v42 = vld [vmem:[%s2 + $0x70] sm:$0xff]
  %v43 = vld [vmem:[%s2 + $0x78] sm:$0xff]
  %v44 = vld [vmem:[%s3] sm:$0xff]
  %v45 = vld [vmem:[%s3 + $0x8] sm:$0xff]
  %v46 = vld [vmem:[%s3 + $0x10] sm:$0xff]
  %v47 = vld [vmem:[%s3 + $0x18] sm:$0xff]
  %v48 = vld [vmem:[%s3 + $0x20] sm:$0xff]
  %v49 = vld [vmem:[%s3 + $0x28] sm:$0xff]
  %v50 = vld [vmem:[%s3 + $0x30] sm:$0xff]
  %v51 = vld [vmem:[%s3 + $0x38] sm:$0xff]
  %v52 = vld [vmem:[%s3 + $0x40] sm:$0xff]
  %v53 = vld [vmem:[%s3 + $0x48] sm:$0xff]
  %v54 = vld [vmem:[%s3 + $0x50] sm:$0xff]
  %v55 = vld [vmem:[%s3 + $0x58] sm:$0xff]
  %v56 = vld [vmem:[%s3 + $0x60] sm:$0xff]
  %v57 = vld [vmem:[%s3 + $0x68] sm:$0xff]
  %v58 = vld [vmem:[%s3 + $0x70] sm:$0xff]
  %v59 = vld [vmem:[%s3 + $0x78] sm:$0xff]
  %v60 = vld [vmem:[%s4] sm:$0x1]
  %v61 = vld [vmem:[%s6] sm:$0xff]
  %s62 = smul.u32 0, 8
  %v63 = vld [vmem:[%s0] sm:$0xff]
  %64 = vmatpush.msra.mxu0 %v59
  %65 = vmatpush.msra.mxu0 %v58
  %66 = vmatpush.msra.mxu0 %v57
  %67 = vmatpush.msra.mxu0 %v56
  %68 = vmatpush.msra.mxu0 %v55
  %69 = vmatpush.msra.mxu0 %v54
  %70 = vmatpush.msra.mxu0 %v53
  %71 = vmatpush.msra.mxu0 %v52
  %72 = vmatpush.msra.mxu0 %v51
  %73 = vmatpush.msra.mxu0 %v50
  %74 = vmatpush.msra.mxu0 %v49
  %75 = vmatpush.msra.mxu0 %v48
  %76 = vmatpush.msra.mxu0 %v47
  %77 = vmatpush.msra.mxu0 %v46
  %78 = vmatpush.msra.mxu0 %v45
  %79 = vmatpush.msra.mxu0 %v44
  %80 = vmatmul.f32.gmra.mxu0 %v61
  %v81 = vpop.f32.mrf.mxu0
  %v82 = vadd.f32 0.0, %v81
  %83 = vdwg.mxu0
  %84 = vmatpush.msra.mxu0 %v43
  %85 = vmatpush.msra.mxu0 %v42
  %86 = vmatpush.msra.mxu0 %v41
  %87 = vmatpush.msra.mxu0 %v40
  %88 = vmatpush.msra.mxu0 %v39
  %89 = vmatpush.msra.mxu0 %v38
  %90 = vmatpush.msra.mxu0 %v37
  %91 = vmatpush.msra.mxu0 %v36
  %92 = vmatpush.msra.mxu0 %v35
  %93 = vmatpush.msra.mxu0 %v34
  %94 = vmatpush.msra.mxu0 %v33
  %95 = vmatpush.msra.mxu0 %v32
  %96 = vmatpush.msra.mxu0 %v31
  %97 = vmatpush.msra.mxu0 %v30
  %98 = vmatpush.msra.mxu0 %v29
  %99 = vmatpush.msra.mxu0 %v28
  %100 = vmatmul.f32.gmra.mxu0 %v63
  %v101 = vpop.f32.mrf.mxu0
  %v102 = vadd.f32 %v82, %v101
  %103 = vdwg.mxu0
  %v105 = vperm.slane %v60, 0
  %v107 = vadd.f32 %v102, %v105
  %p108 = scmp.lt.s32.totalorder %s62, 8
  %v109 = vtanh.pop %v107
  %s110 = scalar_select %p108, 1, 0
  %v111 = vstv %s110
  %vm112 = vcmp.eq.s32.totalorder %v111, 1
  %v113 = vsel %vm112, %v109, %v61
  %114 = vst [vmem:[%s5] sm:$0xff] %v113
  %s115 = sadd.s32 %s62, 1
  %s116 = scalar_lea.vmem %s0, 8
  %v117 = vld [vmem:[%s116] sm:$0xff]
  %118 = vmatpush.msra.mxu0 %v59
  %119 = vmatpush.msra.mxu0 %v58
  %120 = vmatpush.msra.mxu0 %v57
  %121 = vmatpush.msra.mxu0 %v56
  %122 = vmatpush.msra.mxu0 %v55
  %123 = vmatpush.msra.mxu0 %v54
  %124 = vmatpush.msra.mxu0 %v53
  %125 = vmatpush.msra.mxu0 %v52
  %126 = vmatpush.msra.mxu0 %v51
  %127 = vmatpush.msra.mxu0 %v50
  %128 = vmatpush.msra.mxu0 %v49
  %129 = vmatpush.msra.mxu0 %v48
  %130 = vmatpush.msra.mxu0 %v47
  %131 = vmatpush.msra.mxu0 %v46
  %132 = vmatpush.msra.mxu0 %v45
  %133 = vmatpush.msra.mxu0 %v44
  %134 = vmatmul.f32.gmra.mxu0 %v113
  %v135 = vpop.f32.mrf.mxu0
  %v136 = vadd.f32 0.0, %v135
  %137 = vdwg.mxu0
  %138 = vmatpush.msra.mxu0 %v43
  %139 = vmatpush.msra.mxu0 %v42
  %140 = vmatpush.msra.mxu0 %v41
  %141 = vmatpush.msra.mxu0 %v40
  %142 = vmatpush.msra.mxu0 %v39
  %143 = vmatpush.msra.mxu0 %v38
  %144 = vmatpush.msra.mxu0 %v37
  %145 = vmatpush.msra.mxu0 %v36
  %146 = vmatpush.msra.mxu0 %v35
  %147 = vmatpush.msra.mxu0 %v34
  %148 = vmatpush.msra.mxu0 %v33
  %149 = vmatpush.msra.mxu0 %v32
  %150 = vmatpush.msra.mxu0 %v31
  %151 = vmatpush.msra.mxu0 %v30
  %152 = vmatpush.msra.mxu0 %v29
  %153 = vmatpush.msra.mxu0 %v28
  %154 = vmatmul.f32.gmra.mxu0 %v117
  %v155 = vpop.f32.mrf.mxu0
  %v156 = vadd.f32 %v136, %v155
  %157 = vdwg.mxu0
  %v158 = vadd.f32 %v156, %v105
  %p159 = scmp.lt.s32.totalorder %s115, 8
  %v160 = vtanh.pop %v158
  %s161 = scalar_select %p159, 1, 0
  %v162 = vstv %s161
  %vm163 = vcmp.eq.s32.totalorder %v162, 1
  %v164 = vsel %vm163, %v160, %v113
  %s165 = scalar_lea.vmem %s5, 8
  %166 = vst [vmem:[%s165] sm:$0xff] %v164
  %s167 = sadd.s32 %s62, 2
  %s168 = scalar_lea.vmem %s0, 16
  %v169 = vld [vmem:[%s168] sm:$0xff]
  %170 = vmatpush.msra.mxu0 %v59
  %171 = vmatpush.msra.mxu0 %v58
  %172 = vmatpush.msra.mxu0 %v57
  %173 = vmatpush.msra.mxu0 %v56
  %174 = vmatpush.msra.mxu0 %v55
  %175 = vmatpush.msra.mxu0 %v54
  %176 = vmatpush.msra.mxu0 %v53
  %177 = vmatpush.msra.mxu0 %v52
  %178 = vmatpush.msra.mxu0 %v51
  %179 = vmatpush.msra.mxu0 %v50
  %180 = vmatpush.msra.mxu0 %v49
  %181 = vmatpush.msra.mxu0 %v48
  %182 = vmatpush.msra.mxu0 %v47
  %183 = vmatpush.msra.mxu0 %v46
  %184 = vmatpush.msra.mxu0 %v45
  %185 = vmatpush.msra.mxu0 %v44
  %186 = vmatmul.f32.gmra.mxu0 %v164
  %v187 = vpop.f32.mrf.mxu0
  %v188 = vadd.f32 0.0, %v187
  %189 = vdwg.mxu0
  %190 = vmatpush.msra.mxu0 %v43
  %191 = vmatpush.msra.mxu0 %v42
  %192 = vmatpush.msra.mxu0 %v41
  %193 = vmatpush.msra.mxu0 %v40
  %194 = vmatpush.msra.mxu0 %v39
  %195 = vmatpush.msra.mxu0 %v38
  %196 = vmatpush.msra.mxu0 %v37
  %197 = vmatpush.msra.mxu0 %v36
  %198 = vmatpush.msra.mxu0 %v35
  %199 = vmatpush.msra.mxu0 %v34
  %200 = vmatpush.msra.mxu0 %v33
  %201 = vmatpush.msra.mxu0 %v32
  %202 = vmatpush.msra.mxu0 %v31
  %203 = vmatpush.msra.mxu0 %v30
  %204 = vmatpush.msra.mxu0 %v29
  %205 = vmatpush.msra.mxu0 %v28
  %206 = vmatmul.f32.gmra.mxu0 %v169
  %v207 = vpop.f32.mrf.mxu0
  %v208 = vadd.f32 %v188, %v207
  %209 = vdwg.mxu0
  %v210 = vadd.f32 %v208, %v105
  %p211 = scmp.lt.s32.totalorder %s167, 8
  %v212 = vtanh.pop %v210
  %s213 = scalar_select %p211, 1, 0
  %v214 = vstv %s213
  %vm215 = vcmp.eq.s32.totalorder %v214, 1
  %v216 = vsel %vm215, %v212, %v164
  %s217 = scalar_lea.vmem %s5, 16
  %218 = vst [vmem:[%s217] sm:$0xff] %v216
  %s219 = sadd.s32 %s62, 3
  %s220 = scalar_lea.vmem %s0, 24
  %v221 = vld [vmem:[%s220] sm:$0xff]
  %222 = vmatpush.msra.mxu0 %v59
  %223 = vmatpush.msra.mxu0 %v58
  %224 = vmatpush.msra.mxu0 %v57
  %225 = vmatpush.msra.mxu0 %v56
  %226 = vmatpush.msra.mxu0 %v55
  %227 = vmatpush.msra.mxu0 %v54
  %228 = vmatpush.msra.mxu0 %v53
  %229 = vmatpush.msra.mxu0 %v52
  %230 = vmatpush.msra.mxu0 %v51
  %231 = vmatpush.msra.mxu0 %v50
  %232 = vmatpush.msra.mxu0 %v49
  %233 = vmatpush.msra.mxu0 %v48
  %234 = vmatpush.msra.mxu0 %v47
  %235 = vmatpush.msra.mxu0 %v46
  %236 = vmatpush.msra.mxu0 %v45
  %237 = vmatpush.msra.mxu0 %v44
  %238 = vmatmul.f32.gmra.mxu0 %v216
  %v239 = vpop.f32.mrf.mxu0
  %v240 = vadd.f32 0.0, %v239
  %241 = vdwg.mxu0
  %242 = vmatpush.msra.mxu0 %v43
  %243 = vmatpush.msra.mxu0 %v42
  %244 = vmatpush.msra.mxu0 %v41
  %245 = vmatpush.msra.mxu0 %v40
  %246 = vmatpush.msra.mxu0 %v39
  %247 = vmatpush.msra.mxu0 %v38
  %248 = vmatpush.msra.mxu0 %v37
  %249 = vmatpush.msra.mxu0 %v36
  %250 = vmatpush.msra.mxu0 %v35
  %251 = vmatpush.msra.mxu0 %v34
  %252 = vmatpush.msra.mxu0 %v33
  %253 = vmatpush.msra.mxu0 %v32
  %254 = vmatpush.msra.mxu0 %v31
  %255 = vmatpush.msra.mxu0 %v30
  %256 = vmatpush.msra.mxu0 %v29
  %257 = vmatpush.msra.mxu0 %v28
  %258 = vmatmul.f32.gmra.mxu0 %v221
  %v259 = vpop.f32.mrf.mxu0
  %v260 = vadd.f32 %v240, %v259
  %261 = vdwg.mxu0
  %v262 = vadd.f32 %v260, %v105
  %p263 = scmp.lt.s32.totalorder %s219, 8
  %v264 = vtanh.pop %v262
  %s265 = scalar_select %p263, 1, 0
  %v266 = vstv %s265
  %vm267 = vcmp.eq.s32.totalorder %v266, 1
  %v268 = vsel %vm267, %v264, %v216
  %s269 = scalar_lea.vmem %s5, 24
  %270 = vst [vmem:[%s269] sm:$0xff] %v268
  %s271 = sadd.s32 %s62, 4
  %s272 = scalar_lea.vmem %s0, 32
  %v273 = vld [vmem:[%s272] sm:$0xff]
  %274 = vmatpush.msra.mxu0 %v59
  %275 = vmatpush.msra.mxu0 %v58
  %276 = vmatpush.msra.mxu0 %v57
  %277 = vmatpush.msra.mxu0 %v56
  %278 = vmatpush.msra.mxu0 %v55
  %279 = vmatpush.msra.mxu0 %v54
  %280 = vmatpush.msra.mxu0 %v53
  %281 = vmatpush.msra.mxu0 %v52
  %282 = vmatpush.msra.mxu0 %v51
  %283 = vmatpush.msra.mxu0 %v50
  %284 = vmatpush.msra.mxu0 %v49
  %285 = vmatpush.msra.mxu0 %v48
  %286 = vmatpush.msra.mxu0 %v47
  %287 = vmatpush.msra.mxu0 %v46
  %288 = vmatpush.msra.mxu0 %v45
  %289 = vmatpush.msra.mxu0 %v44
  %290 = vmatmul.f32.gmra.mxu0 %v268
  %v291 = vpop.f32.mrf.mxu0
  %v292 = vadd.f32 0.0, %v291
  %293 = vdwg.mxu0
  %294 = vmatpush.msra.mxu0 %v43
  %295 = vmatpush.msra.mxu0 %v42
  %296 = vmatpush.msra.mxu0 %v41
  %297 = vmatpush.msra.mxu0 %v40
  %298 = vmatpush.msra.mxu0 %v39
  %299 = vmatpush.msra.mxu0 %v38
  %300 = vmatpush.msra.mxu0 %v37
  %301 = vmatpush.msra.mxu0 %v36
  %302 = vmatpush.msra.mxu0 %v35
  %303 = vmatpush.msra.mxu0 %v34
  %304 = vmatpush.msra.mxu0 %v33
  %305 = vmatpush.msra.mxu0 %v32
  %306 = vmatpush.msra.mxu0 %v31
  %307 = vmatpush.msra.mxu0 %v30
  %308 = vmatpush.msra.mxu0 %v29
  %309 = vmatpush.msra.mxu0 %v28
  %310 = vmatmul.f32.gmra.mxu0 %v273
  %v311 = vpop.f32.mrf.mxu0
  %v312 = vadd.f32 %v292, %v311
  %313 = vdwg.mxu0
  %v314 = vadd.f32 %v312, %v105
  %p315 = scmp.lt.s32.totalorder %s271, 8
  %v316 = vtanh.pop %v314
  %s317 = scalar_select %p315, 1, 0
  %v318 = vstv %s317
  %vm319 = vcmp.eq.s32.totalorder %v318, 1
  %v320 = vsel %vm319, %v316, %v268
  %s321 = scalar_lea.vmem %s5, 32
  %322 = vst [vmem:[%s321] sm:$0xff] %v320
  %s323 = sadd.s32 %s62, 5
  %s324 = scalar_lea.vmem %s0, 40
  %v325 = vld [vmem:[%s324] sm:$0xff]
  %326 = vmatpush.msra.mxu0 %v59
  %327 = vmatpush.msra.mxu0 %v58
  %328 = vmatpush.msra.mxu0 %v57
  %329 = vmatpush.msra.mxu0 %v56
  %330 = vmatpush.msra.mxu0 %v55
  %331 = vmatpush.msra.mxu0 %v54
  %332 = vmatpush.msra.mxu0 %v53
  %333 = vmatpush.msra.mxu0 %v52
  %334 = vmatpush.msra.mxu0 %v51
  %335 = vmatpush.msra.mxu0 %v50
  %336 = vmatpush.msra.mxu0 %v49
  %337 = vmatpush.msra.mxu0 %v48
  %338 = vmatpush.msra.mxu0 %v47
  %339 = vmatpush.msra.mxu0 %v46
  %340 = vmatpush.msra.mxu0 %v45
  %341 = vmatpush.msra.mxu0 %v44
  %342 = vmatmul.f32.gmra.mxu0 %v320
  %v343 = vpop.f32.mrf.mxu0
  %v344 = vadd.f32 0.0, %v343
  %345 = vdwg.mxu0
  %346 = vmatpush.msra.mxu0 %v43
  %347 = vmatpush.msra.mxu0 %v42
  %348 = vmatpush.msra.mxu0 %v41
  %349 = vmatpush.msra.mxu0 %v40
  %350 = vmatpush.msra.mxu0 %v39
  %351 = vmatpush.msra.mxu0 %v38
  %352 = vmatpush.msra.mxu0 %v37
  %353 = vmatpush.msra.mxu0 %v36
  %354 = vmatpush.msra.mxu0 %v35
  %355 = vmatpush.msra.mxu0 %v34
  %356 = vmatpush.msra.mxu0 %v33
  %357 = vmatpush.msra.mxu0 %v32
  %358 = vmatpush.msra.mxu0 %v31
  %359 = vmatpush.msra.mxu0 %v30
  %360 = vmatpush.msra.mxu0 %v29
  %361 = vmatpush.msra.mxu0 %v28
  %362 = vmatmul.f32.gmra.mxu0 %v325
  %v363 = vpop.f32.mrf.mxu0
  %v364 = vadd.f32 %v344, %v363
  %365 = vdwg.mxu0
  %v366 = vadd.f32 %v364, %v105
  %p367 = scmp.lt.s32.totalorder %s323, 8
  %v368 = vtanh.pop %v366
  %s369 = scalar_select %p367, 1, 0
  %v370 = vstv %s369
  %vm371 = vcmp.eq.s32.totalorder %v370, 1
  %v372 = vsel %vm371, %v368, %v320
  %s373 = scalar_lea.vmem %s5, 40
  %374 = vst [vmem:[%s373] sm:$0xff] %v372
  %s375 = sadd.s32 %s62, 6
  %s376 = scalar_lea.vmem %s0, 48
  %v377 = vld [vmem:[%s376] sm:$0xff]
  %378 = vmatpush.msra.mxu0 %v59
  %379 = vmatpush.msra.mxu0 %v58
  %380 = vmatpush.msra.mxu0 %v57
  %381 = vmatpush.msra.mxu0 %v56
  %382 = vmatpush.msra.mxu0 %v55
  %383 = vmatpush.msra.mxu0 %v54
  %384 = vmatpush.msra.mxu0 %v53
  %385 = vmatpush.msra.mxu0 %v52
  %386 = vmatpush.msra.mxu0 %v51
  %387 = vmatpush.msra.mxu0 %v50
  %388 = vmatpush.msra.mxu0 %v49
  %389 = vmatpush.msra.mxu0 %v48
  %390 = vmatpush.msra.mxu0 %v47
  %391 = vmatpush.msra.mxu0 %v46
  %392 = vmatpush.msra.mxu0 %v45
  %393 = vmatpush.msra.mxu0 %v44
  %394 = vmatmul.f32.gmra.mxu0 %v372
  %v395 = vpop.f32.mrf.mxu0
  %v396 = vadd.f32 0.0, %v395
  %397 = vdwg.mxu0
  %398 = vmatpush.msra.mxu0 %v43
  %399 = vmatpush.msra.mxu0 %v42
  %400 = vmatpush.msra.mxu0 %v41
  %401 = vmatpush.msra.mxu0 %v40
  %402 = vmatpush.msra.mxu0 %v39
  %403 = vmatpush.msra.mxu0 %v38
  %404 = vmatpush.msra.mxu0 %v37
  %405 = vmatpush.msra.mxu0 %v36
  %406 = vmatpush.msra.mxu0 %v35
  %407 = vmatpush.msra.mxu0 %v34
  %408 = vmatpush.msra.mxu0 %v33
  %409 = vmatpush.msra.mxu0 %v32
  %410 = vmatpush.msra.mxu0 %v31
  %411 = vmatpush.msra.mxu0 %v30
  %412 = vmatpush.msra.mxu0 %v29
  %413 = vmatpush.msra.mxu0 %v28
  %414 = vmatmul.f32.gmra.mxu0 %v377
  %v415 = vpop.f32.mrf.mxu0
  %v416 = vadd.f32 %v396, %v415
  %417 = vdwg.mxu0
  %v418 = vadd.f32 %v416, %v105
  %p419 = scmp.lt.s32.totalorder %s375, 8
  %v420 = vtanh.pop %v418
  %s421 = scalar_select %p419, 1, 0
  %v422 = vstv %s421
  %vm423 = vcmp.eq.s32.totalorder %v422, 1
  %v424 = vsel %vm423, %v420, %v372
  %s425 = scalar_lea.vmem %s5, 48
  %426 = vst [vmem:[%s425] sm:$0xff] %v424
  %s427 = sadd.s32 %s62, 7
  %s428 = scalar_lea.vmem %s0, 56
  %v429 = vld [vmem:[%s428] sm:$0xff]
  %430 = vmatpush.msra.mxu0 %v59
  %431 = vmatpush.msra.mxu0 %v58
  %432 = vmatpush.msra.mxu0 %v57
  %433 = vmatpush.msra.mxu0 %v56
  %434 = vmatpush.msra.mxu0 %v55
  %435 = vmatpush.msra.mxu0 %v54
  %436 = vmatpush.msra.mxu0 %v53
  %437 = vmatpush.msra.mxu0 %v52
  %438 = vmatpush.msra.mxu0 %v51
  %439 = vmatpush.msra.mxu0 %v50
  %440 = vmatpush.msra.mxu0 %v49
  %441 = vmatpush.msra.mxu0 %v48
  %442 = vmatpush.msra.mxu0 %v47
  %443 = vmatpush.msra.mxu0 %v46
  %444 = vmatpush.msra.mxu0 %v45
  %445 = vmatpush.msra.mxu0 %v44
  %446 = vmatmul.f32.gmra.mxu0 %v424
  %v447 = vpop.f32.mrf.mxu0
  %v448 = vadd.f32 0.0, %v447
  %449 = vdwg.mxu0
  %450 = vmatpush.msra.mxu0 %v43
  %451 = vmatpush.msra.mxu0 %v42
  %452 = vmatpush.msra.mxu0 %v41
  %453 = vmatpush.msra.mxu0 %v40
  %454 = vmatpush.msra.mxu0 %v39
  %455 = vmatpush.msra.mxu0 %v38
  %456 = vmatpush.msra.mxu0 %v37
  %457 = vmatpush.msra.mxu0 %v36
  %458 = vmatpush.msra.mxu0 %v35
  %459 = vmatpush.msra.mxu0 %v34
  %460 = vmatpush.msra.mxu0 %v33
  %461 = vmatpush.msra.mxu0 %v32
  %462 = vmatpush.msra.mxu0 %v31
  %463 = vmatpush.msra.mxu0 %v30
  %464 = vmatpush.msra.mxu0 %v29
  %465 = vmatpush.msra.mxu0 %v28
  %466 = vmatmul.f32.gmra.mxu0 %v429
  %v467 = vpop.f32.mrf.mxu0
  %v468 = vadd.f32 %v448, %v467
  %469 = vdwg.mxu0
  %v470 = vadd.f32 %v468, %v105
  %p471 = scmp.lt.s32.totalorder %s427, 8
  %v472 = vtanh.pop %v470
  %s473 = scalar_select %p471, 1, 0
  %v474 = vstv %s473
  %vm475 = vcmp.eq.s32.totalorder %v474, 1
  %v476 = vsel %vm475, %v472, %v424
  %s477 = scalar_lea.vmem %s5, 56
  %478 = vst [vmem:[%s477] sm:$0xff] %v476
  %479 = vst [vmem:[%s6] sm:$0xff] %v476
  // Predicated region
  $region26: #{text_generator_forward.2} parent=0 // pred_check
    _
  $region27: #{text_generator_forward.2} parent=0 // pred_check_branch
    %481 = sbr.rel (0) target = $region29
  $region28: #{text_generator_forward.2} parent=0 // pred_region
    _
  $region29: #{text_generator_forward.2} parent=0 // pred_fallthru
    _
  // Predicated region
  $region30: #{text_generator_forward.2} parent=0 // pred_check
    _
  $region31: #{text_generator_forward.2} parent=0 // pred_check_branch
    %483 = sbr.rel (0) target = $region33
  $region32: #{text_generator_forward.2} parent=0 // pred_region
    _
  $region33: #{text_generator_forward.2} parent=0 // pred_fallthru
    _
  // Predicated region
  $region34: #{text_generator_forward.2} parent=0 // pred_check
    _
  $region35: #{text_generator_forward.2} parent=0 // pred_check_branch
    %485 = sbr.rel (0) target = $region37
  $region36: #{text_generator_forward.2} parent=0 // pred_region
    _
  $region37: #{text_generator_forward.2} parent=0 // pred_fallthru
    _
  // Predicated region
  $region38: #{text_generator_forward.2} parent=0 // pred_check
    _
  $region39: #{text_generator_forward.2} parent=0 // pred_check_branch
    %487 = sbr.rel (0) target = $region41
  $region40: #{text_generator_forward.2} parent=0 // pred_region
    _
  $region41: #{text_generator_forward.2} parent=0 // pred_fallthru
    _

</llo_original>
